<compile_context>
chip_gen: v7x
topology: tpu7x:2x2x1
jax: 0.10.0
libtpu: 0.0.40
codegen_flags: <defaults>
</compile_context>

<pallas_src>
import functools

import jax
import jax.numpy as jnp
from jax import lax
from jax.experimental import pallas as pl
from jax.experimental.pallas import tpu as pltpu


def _round_up(n, m):
    return ((n + m - 1) // m) * m


def _choose_tm(B):
    """Batch-tile size: whole batch for small B, otherwise tiles of <=512 rows
    arranged so the grid has at least 2 steps (v7x megacore sharding)."""
    if B <= 256:
        return _round_up(B, 8)
    half = _round_up((B + 1) // 2, 8)
    return min(512, half)


def _cbm_kernel(num_classes,
                x_ref,
                w0_ref, b0_ref, w1_ref, b1_ref, w2_ref, b2_ref, wo_ref, bo_ref,
                wh1_ref, bh1_ref, wh2_ref, bh2_ref,
                c_ref, probs_ref, logits_ref):
    f32 = jnp.float32
    bf16 = jnp.bfloat16

    def dense(a, w_ref, b_ref):
        # bf16 MXU matmul with f32 accumulation; bias add / activations in f32.
        return jnp.dot(a, w_ref[...], preferred_element_type=f32) + b_ref[...]

    # ----- FCNN encoder: Linear->ReLU, 2 x (Linear->ReLU), Linear -----
    x = x_ref[...].astype(bf16)                         # cast in-kernel (no wrapper pass)
    h = jnp.maximum(dense(x, w0_ref, b0_ref), 0.0).astype(bf16)
    h = jnp.maximum(dense(h, w1_ref, b1_ref), 0.0).astype(bf16)
    h = jnp.maximum(dense(h, w2_ref, b2_ref), 0.0).astype(bf16)
    z = dense(h, wo_ref, bo_ref)                        # f32 concept pre-acts

    # act_c: sigmoid with exact divide (exp dominates; exactness is free).
    c = 1.0 / (1.0 + jnp.exp(-z))
    c_ref[...] = c.astype(c_ref.dtype)

    # ----- FCNN head: Linear -> ReLU -> Linear -----
    hy = jnp.maximum(dense(c.astype(bf16), wh1_ref, bh1_ref), 0.0).astype(bf16)
    logits = dense(hy, wh2_ref, bh2_ref)                # f32
    logits_ref[...] = logits.astype(logits_ref.dtype)

    # act_y: softmax over the *valid* class lanes (padded lanes masked out).
    # Exact division so probs sum to 1 to float precision.
    col = lax.broadcasted_iota(jnp.int32, logits.shape, 1)
    masked = jnp.where(col < num_classes, logits, -1e30)
    m = jnp.max(masked, axis=1, keepdims=True)
    e = jnp.exp(masked - m)
    probs = e / jnp.sum(e, axis=1, keepdims=True)
    probs_ref[...] = probs.astype(probs_ref.dtype)


@jax.jit
def cbm_forward(x, params):
    B, num_covariates = x.shape
    num_hidden = params["w0"].shape[1]
    num_concepts = params["wo"].shape[1]
    num_hidden_y = params["wh1"].shape[1]
    num_classes = params["wh2"].shape[1]

    f32 = jnp.float32
    bf16 = jnp.bfloat16

    # Lane-dense padding of the tiny *output/hidden* feature dims only.
    Hp = _round_up(num_hidden, 128)
    Cp = _round_up(num_concepts, 128)
    HYp = _round_up(num_hidden_y, 128)
    NCp = _round_up(num_classes, 128)

    TM = _choose_tm(B)
    Bp = _round_up(B, TM)

    def pad_w(w, rows, cols):
        return jnp.pad(w, ((0, rows - w.shape[0]), (0, cols - w.shape[1]))).astype(bf16)

    def pad_b(b, cols):
        return jnp.pad(b, ((0, 0), (0, cols - b.shape[1]))).astype(f32)

    # x stays unpadded in the feature dim (full-extent last-dim block);
    # pad rows only if the batch doesn't tile evenly.
    xp = x if Bp == B else jnp.pad(x, ((0, Bp - B), (0, 0)))

    operands = (
        xp,
        pad_w(params["w0"], num_covariates, Hp), pad_b(params["b0"], Hp),
        pad_w(params["w1"], Hp, Hp), pad_b(params["b1"], Hp),
        pad_w(params["w2"], Hp, Hp), pad_b(params["b2"], Hp),
        pad_w(params["wo"], Hp, Cp), pad_b(params["bo"], Cp),
        pad_w(params["wh1"], Cp, HYp), pad_b(params["bh1"], HYp),
        pad_w(params["wh2"], HYp, NCp), pad_b(params["bh2"], NCp),
    )

    def resident(shape):
        # Weights / biases: full-array block, VMEM-resident across batch steps.
        return pl.BlockSpec(shape, lambda i: (0, 0))

    def batched(cols):
        return pl.BlockSpec((TM, cols), lambda i: (i, 0))

    in_specs = [batched(num_covariates)] + [resident(op.shape) for op in operands[1:]]

    out_shapes = (
        jax.ShapeDtypeStruct((Bp, Cp), f32),     # c            (lane-padded)
        jax.ShapeDtypeStruct((Bp, NCp), f32),    # y_pred_probs (lane-padded)
        jax.ShapeDtypeStruct((Bp, NCp), f32),    # y_pred_logits(lane-padded)
    )
    out_specs = (batched(Cp), batched(NCp), batched(NCp))

    c_p, probs_p, logits_p = pl.pallas_call(
        functools.partial(_cbm_kernel, num_classes),
        out_shape=out_shapes,
        grid=(Bp // TM,),
        in_specs=in_specs,
        out_specs=out_specs,
        compiler_params=pltpu.CompilerParams(
            dimension_semantics=("parallel",),
            vmem_limit_bytes=32 << 20,
        ),
    )(*operands)

    # Slice back to the module's output shapes.
    return (c_p[:B, :num_concepts],
            probs_p[:B, :num_classes],
            logits_p[:B, :num_classes])


def init_params(key, num_covariates, num_concepts, num_hidden_y, num_classes,
                num_hidden=256):
    """Deterministic synthetic parameters (shapes match the PyTorch module).

    Weights are (in_features, out_features), i.e. transposed vs nn.Linear;
    biases are (1, out_features)."""
    ks = jax.random.split(key, 12)

    def lin(kw, kb, n_in, n_out):
        scale = 1.0 / jnp.sqrt(jnp.float32(n_in))
        w = jax.random.uniform(kw, (n_in, n_out), jnp.float32, -scale, scale)
        b = jax.random.uniform(kb, (1, n_out), jnp.float32, -scale, scale)
        return w, b

    w0, b0 = lin(ks[0], ks[1], num_covariates, num_hidden)
    w1, b1 = lin(ks[2], ks[3], num_hidden, num_hidden)
    w2, b2 = lin(ks[4], ks[5], num_hidden, num_hidden)
    wo, bo = lin(ks[6], ks[7], num_hidden, num_concepts)
    wh1, bh1 = lin(ks[8], ks[9], num_concepts, num_hidden_y)
    wh2, bh2 = lin(ks[10], ks[11], num_hidden_y, num_classes)
    return dict(w0=w0, b0=b0, w1=w1, b1=b1, w2=w2, b2=b2, wo=wo, bo=bo,
                wh1=wh1, bh1=bh1, wh2=wh2, bh2=bh2)


if __name__ == "__main__":
    # small shapes consistent with the module's forward
    B = 8
    num_covariates = 32
    num_concepts = 16
    num_hidden_y = 32
    num_classes = 5  # > 2 -> softmax head

    key = jax.random.PRNGKey(0)
    kx, kp = jax.random.split(key)
    x = jax.random.normal(kx, (B, num_covariates), jnp.float32)
    params = init_params(kp, num_covariates, num_concepts, num_hidden_y, num_classes)

    c, probs, logits = cbm_forward(x, params)
    jax.block_until_ready((c, probs, logits))

    # lightweight sanity checks against a pure-JAX f32 reference.
    def ref(x, p):
        h = jnp.maximum(x @ p["w0"] + p["b0"], 0.0)
        h = jnp.maximum(h @ p["w1"] + p["b1"], 0.0)
        h = jnp.maximum(h @ p["w2"] + p["b2"], 0.0)
        cc = jax.nn.sigmoid(h @ p["wo"] + p["bo"])
        hy = jnp.maximum(cc @ p["wh1"] + p["bh1"], 0.0)
        lg = hy @ p["wh2"] + p["bh2"]
        return cc, jax.nn.softmax(lg, axis=1), lg

    c_r, probs_r, logits_r = ref(x, params)

    assert c.shape == (B, num_concepts)
    assert probs.shape == (B, num_classes)
    assert logits.shape == (B, num_classes)
    # bf16 MXU operands -> compare with loose tolerance
    assert jnp.allclose(c, c_r, atol=2e-2), "concept mismatch"
    assert jnp.allclose(logits, logits_r, atol=5e-2), "logit mismatch"
    assert jnp.allclose(probs, probs_r, atol=2e-2), "prob mismatch"
    # exact divide in the softmax -> sums to 1 to float precision
    assert jnp.allclose(jnp.sum(probs, axis=1), 1.0, atol=1e-3), "probs not normalized"

    print("KERNEL_OK")
</pallas_src>

<mosaic_0001>
module attributes {stable_mosaic.version = 11 : i64} {
  func.func @_cbm_kernel(%arg0: i32, %arg1: memref<8x32xf32, #tpu.memory_space<vmem>>, %arg2: memref<32x256xbf16, #tpu.memory_space<vmem>>, %arg3: memref<1x256xf32, #tpu.memory_space<vmem>>, %arg4: memref<256x256xbf16, #tpu.memory_space<vmem>>, %arg5: memref<1x256xf32, #tpu.memory_space<vmem>>, %arg6: memref<256x256xbf16, #tpu.memory_space<vmem>>, %arg7: memref<1x256xf32, #tpu.memory_space<vmem>>, %arg8: memref<256x128xbf16, #tpu.memory_space<vmem>>, %arg9: memref<1x128xf32, #tpu.memory_space<vmem>>, %arg10: memref<128x128xbf16, #tpu.memory_space<vmem>>, %arg11: memref<1x128xf32, #tpu.memory_space<vmem>>, %arg12: memref<128x128xbf16, #tpu.memory_space<vmem>>, %arg13: memref<1x128xf32, #tpu.memory_space<vmem>>, %arg14: memref<8x128xf32, #tpu.memory_space<vmem>>, %arg15: memref<8x128xf32, #tpu.memory_space<vmem>>, %arg16: memref<8x128xf32, #tpu.memory_space<vmem>>) attributes {dimension_semantics = [#tpu.dimension_semantics<parallel>], iteration_bounds = array<i64: 1>, scalar_prefetch = 0 : i64, scratch_operands = 0 : i64, tpu.core_type = #tpu.core_type<tc>, window_params = [{transform_indices = @transform_0, window_bounds = array<i64: 8, 32>}, {pipeline_mode = #tpu.pipeline_mode<synchronous>, transform_indices = @transform_1, window_bounds = array<i64: 32, 256>}, {pipeline_mode = #tpu.pipeline_mode<synchronous>, transform_indices = @transform_2, window_bounds = array<i64: 1, 256>}, {pipeline_mode = #tpu.pipeline_mode<synchronous>, transform_indices = @transform_3, window_bounds = array<i64: 256, 256>}, {pipeline_mode = #tpu.pipeline_mode<synchronous>, transform_indices = @transform_4, window_bounds = array<i64: 1, 256>}, {pipeline_mode = #tpu.pipeline_mode<synchronous>, transform_indices = @transform_5, window_bounds = array<i64: 256, 256>}, {pipeline_mode = #tpu.pipeline_mode<synchronous>, transform_indices = @transform_6, window_bounds = array<i64: 1, 256>}, {pipeline_mode = #tpu.pipeline_mode<synchronous>, transform_indices = @transform_7, window_bounds = array<i64: 256, 128>}, {pipeline_mode = #tpu.pipeline_mode<synchronous>, transform_indices = @transform_8, window_bounds = array<i64: 1, 128>}, {pipeline_mode = #tpu.pipeline_mode<synchronous>, transform_indices = @transform_9, window_bounds = array<i64: 128, 128>}, {pipeline_mode = #tpu.pipeline_mode<synchronous>, transform_indices = @transform_10, window_bounds = array<i64: 1, 128>}, {pipeline_mode = #tpu.pipeline_mode<synchronous>, transform_indices = @transform_11, window_bounds = array<i64: 128, 128>}, {pipeline_mode = #tpu.pipeline_mode<synchronous>, transform_indices = @transform_12, window_bounds = array<i64: 1, 128>}, {transform_indices = @transform_13, window_bounds = array<i64: 8, 128>}, {transform_indices = @transform_14, window_bounds = array<i64: 8, 128>}, {transform_indices = @transform_15, window_bounds = array<i64: 8, 128>}]} {
    %c0 = arith.constant 0 : index
    %c0_0 = arith.constant 0 : index
    %0 = vector.load %arg1[%c0, %c0_0] : memref<8x32xf32, #tpu.memory_space<vmem>>, vector<8x32xf32>
    %1 = arith.truncf %0 : vector<8x32xf32> to vector<8x32xbf16>
    %c0_1 = arith.constant 0 : index
    %c0_2 = arith.constant 0 : index
    %2 = vector.load %arg2[%c0_1, %c0_2] : memref<32x256xbf16, #tpu.memory_space<vmem>>, vector<32x256xbf16>
    %cst = arith.constant dense<0.000000e+00> : vector<8x256xf32>
    %3 = tpu.matmul %1, %2, %cst {dimension_numbers = #tpu.dot_dimension_numbers<[1], [0], [0], [1], [0, 0, 1, 1], [], []>} : vector<8x32xbf16>, vector<32x256xbf16>, vector<8x256xf32> -> vector<8x256xf32>
    %c0_3 = arith.constant 0 : index
    %c0_4 = arith.constant 0 : index
    %4 = vector.load %arg3[%c0_3, %c0_4] : memref<1x256xf32, #tpu.memory_space<vmem>>, vector<1x256xf32>
    %5 = vector.broadcast %4 : vector<1x256xf32> to vector<8x256xf32>
    %6 = arith.addf %3, %5 : vector<8x256xf32>
    %cst_5 = arith.constant 0.000000e+00 : f32
    %7 = vector.broadcast %cst_5 : f32 to vector<8x256xf32>
    %8 = arith.maximumf %6, %7 : vector<8x256xf32>
    %9 = arith.truncf %8 : vector<8x256xf32> to vector<8x256xbf16>
    %c0_6 = arith.constant 0 : index
    %c0_7 = arith.constant 0 : index
    %10 = vector.load %arg4[%c0_6, %c0_7] : memref<256x256xbf16, #tpu.memory_space<vmem>>, vector<256x256xbf16>
    %cst_8 = arith.constant dense<0.000000e+00> : vector<8x256xf32>
    %11 = tpu.matmul %9, %10, %cst_8 {dimension_numbers = #tpu.dot_dimension_numbers<[1], [0], [0], [1], [0, 0, 1, 1], [], []>} : vector<8x256xbf16>, vector<256x256xbf16>, vector<8x256xf32> -> vector<8x256xf32>
    %c0_9 = arith.constant 0 : index
    %c0_10 = arith.constant 0 : index
    %12 = vector.load %arg5[%c0_9, %c0_10] : memref<1x256xf32, #tpu.memory_space<vmem>>, vector<1x256xf32>
    %13 = vector.broadcast %12 : vector<1x256xf32> to vector<8x256xf32>
    %14 = arith.addf %11, %13 : vector<8x256xf32>
    %cst_11 = arith.constant 0.000000e+00 : f32
    %15 = vector.broadcast %cst_11 : f32 to vector<8x256xf32>
    %16 = arith.maximumf %14, %15 : vector<8x256xf32>
    %17 = arith.truncf %16 : vector<8x256xf32> to vector<8x256xbf16>
    %c0_12 = arith.constant 0 : index
    %c0_13 = arith.constant 0 : index
    %18 = vector.load %arg6[%c0_12, %c0_13] : memref<256x256xbf16, #tpu.memory_space<vmem>>, vector<256x256xbf16>
    %cst_14 = arith.constant dense<0.000000e+00> : vector<8x256xf32>
    %19 = tpu.matmul %17, %18, %cst_14 {dimension_numbers = #tpu.dot_dimension_numbers<[1], [0], [0], [1], [0, 0, 1, 1], [], []>} : vector<8x256xbf16>, vector<256x256xbf16>, vector<8x256xf32> -> vector<8x256xf32>
    %c0_15 = arith.constant 0 : index
    %c0_16 = arith.constant 0 : index
    %20 = vector.load %arg7[%c0_15, %c0_16] : memref<1x256xf32, #tpu.memory_space<vmem>>, vector<1x256xf32>
    %21 = vector.broadcast %20 : vector<1x256xf32> to vector<8x256xf32>
    %22 = arith.addf %19, %21 : vector<8x256xf32>
    %cst_17 = arith.constant 0.000000e+00 : f32
    %23 = vector.broadcast %cst_17 : f32 to vector<8x256xf32>
    %24 = arith.maximumf %22, %23 : vector<8x256xf32>
    %25 = arith.truncf %24 : vector<8x256xf32> to vector<8x256xbf16>
    %c0_18 = arith.constant 0 : index
    %c0_19 = arith.constant 0 : index
    %26 = vector.load %arg8[%c0_18, %c0_19] : memref<256x128xbf16, #tpu.memory_space<vmem>>, vector<256x128xbf16>
    %cst_20 = arith.constant dense<0.000000e+00> : vector<8x128xf32>
    %27 = tpu.matmul %25, %26, %cst_20 {dimension_numbers = #tpu.dot_dimension_numbers<[1], [0], [0], [1], [0, 0, 1, 1], [], []>} : vector<8x256xbf16>, vector<256x128xbf16>, vector<8x128xf32> -> vector<8x128xf32>
    %c0_21 = arith.constant 0 : index
    %c0_22 = arith.constant 0 : index
    %28 = vector.load %arg9[%c0_21, %c0_22] : memref<1x128xf32, #tpu.memory_space<vmem>>, vector<1x128xf32>
    %29 = vector.broadcast %28 : vector<1x128xf32> to vector<8x128xf32>
    %30 = arith.addf %27, %29 : vector<8x128xf32>
    %cst_23 = arith.constant 0.000000e+00 : f32
    %31 = vector.broadcast %cst_23 : f32 to vector<8x128xf32>
    %32 = arith.subf %31, %30 : vector<8x128xf32>
    %33 = math.exp %32 : vector<8x128xf32>
    %cst_24 = arith.constant 1.000000e+00 : f32
    %34 = vector.broadcast %cst_24 : f32 to vector<8x128xf32>
    %35 = arith.addf %34, %33 : vector<8x128xf32>
    %cst_25 = arith.constant 1.000000e+00 : f32
    %36 = vector.broadcast %cst_25 : f32 to vector<8x128xf32>
    %37 = arith.divf %36, %35 : vector<8x128xf32>
    %c0_26 = arith.constant 0 : index
    %c0_27 = arith.constant 0 : index
    %38 = vector.load %arg14[%c0_26, %c0_27] : memref<8x128xf32, #tpu.memory_space<vmem>>, vector<8x128xf32>
    tpu.vector_store %arg14[%c0_26, %c0_27], %37 {strides = array<i32>} : memref<8x128xf32, #tpu.memory_space<vmem>>, vector<8x128xf32>,
    %39 = arith.truncf %37 : vector<8x128xf32> to vector<8x128xbf16>
    %c0_28 = arith.constant 0 : index
    %c0_29 = arith.constant 0 : index
    %40 = vector.load %arg10[%c0_28, %c0_29] : memref<128x128xbf16, #tpu.memory_space<vmem>>, vector<128x128xbf16>
    %cst_30 = arith.constant dense<0.000000e+00> : vector<8x128xf32>
    %41 = tpu.matmul %39, %40, %cst_30 {dimension_numbers = #tpu.dot_dimension_numbers<[1], [0], [0], [1], [0, 0, 1, 1], [], []>} : vector<8x128xbf16>, vector<128x128xbf16>, vector<8x128xf32> -> vector<8x128xf32>
    %c0_31 = arith.constant 0 : index
    %c0_32 = arith.constant 0 : index
    %42 = vector.load %arg11[%c0_31, %c0_32] : memref<1x128xf32, #tpu.memory_space<vmem>>, vector<1x128xf32>
    %43 = vector.broadcast %42 : vector<1x128xf32> to vector<8x128xf32>
    %44 = arith.addf %41, %43 : vector<8x128xf32>
    %cst_33 = arith.constant 0.000000e+00 : f32
    %45 = vector.broadcast %cst_33 : f32 to vector<8x128xf32>
    %46 = arith.maximumf %44, %45 : vector<8x128xf32>
    %47 = arith.truncf %46 : vector<8x128xf32> to vector<8x128xbf16>
    %c0_34 = arith.constant 0 : index
    %c0_35 = arith.constant 0 : index
    %48 = vector.load %arg12[%c0_34, %c0_35] : memref<128x128xbf16, #tpu.memory_space<vmem>>, vector<128x128xbf16>
    %cst_36 = arith.constant dense<0.000000e+00> : vector<8x128xf32>
    %49 = tpu.matmul %47, %48, %cst_36 {dimension_numbers = #tpu.dot_dimension_numbers<[1], [0], [0], [1], [0, 0, 1, 1], [], []>} : vector<8x128xbf16>, vector<128x128xbf16>, vector<8x128xf32> -> vector<8x128xf32>
    %c0_37 = arith.constant 0 : index
    %c0_38 = arith.constant 0 : index
    %50 = vector.load %arg13[%c0_37, %c0_38] : memref<1x128xf32, #tpu.memory_space<vmem>>, vector<1x128xf32>
    %51 = vector.broadcast %50 : vector<1x128xf32> to vector<8x128xf32>
    %52 = arith.addf %49, %51 : vector<8x128xf32>
    %c0_39 = arith.constant 0 : index
    %c0_40 = arith.constant 0 : index
    %53 = vector.load %arg16[%c0_39, %c0_40] : memref<8x128xf32, #tpu.memory_space<vmem>>, vector<8x128xf32>
    tpu.vector_store %arg16[%c0_39, %c0_40], %52 {strides = array<i32>} : memref<8x128xf32, #tpu.memory_space<vmem>>, vector<8x128xf32>,
    %54 = tpu.iota {dimensions = array<i32: 1>} : vector<8x128xi32>
    %c5_i32 = arith.constant 5 : i32
    %55 = vector.broadcast %c5_i32 : i32 to vector<8x128xi32>
    %56 = arith.cmpi slt, %54, %55 : vector<8x128xi32>
    %cst_41 = arith.constant -1.000000e+30 : f32
    %57 = vector.broadcast %cst_41 : f32 to vector<8x128xf32>
    %58 = arith.select %56, %52, %57 : vector<8x128xi1>, vector<8x128xf32>
    %cst_42 = arith.constant dense<0xFF800000> : vector<8xf32>
    %59 = vector.multi_reduction <maximumf>, %58, %cst_42 [1] : vector<8x128xf32> to vector<8xf32>
    %60 = vector.shape_cast %59 : vector<8xf32> to vector<8x1xf32>
    %61 = vector.broadcast %60 : vector<8x1xf32> to vector<8x128xf32>
    %62 = arith.subf %58, %61 : vector<8x128xf32>
    %63 = math.exp %62 : vector<8x128xf32>
    %cst_43 = arith.constant dense<0.000000e+00> : vector<8xf32>
    %64 = vector.multi_reduction <add>, %63, %cst_43 [1] : vector<8x128xf32> to vector<8xf32>
    %65 = vector.shape_cast %64 : vector<8xf32> to vector<8x1xf32>
    %66 = vector.broadcast %65 : vector<8x1xf32> to vector<8x128xf32>
    %67 = arith.divf %63, %66 : vector<8x128xf32>
    %c0_44 = arith.constant 0 : index
    %c0_45 = arith.constant 0 : index
    %68 = vector.load %arg15[%c0_44, %c0_45] : memref<8x128xf32, #tpu.memory_space<vmem>>, vector<8x128xf32>
    tpu.vector_store %arg15[%c0_44, %c0_45], %67 {strides = array<i32>} : memref<8x128xf32, #tpu.memory_space<vmem>>, vector<8x128xf32>,
    return
  }
  func.func @transform_0(%arg0: i32) -> (i32, i32) {
    %c0_i32 = arith.constant 0 : i32
    %c0_i32_0 = arith.constant 0 : i32
    return %arg0, %c0_i32 : i32, i32
  }
  func.func @transform_1(%arg0: i32) -> (i32, i32) {
    %c0_i32 = arith.constant 0 : i32
    %c0_i32_0 = arith.constant 0 : i32
    %c0_i32_1 = arith.constant 0 : i32
    return %c0_i32, %c0_i32_0 : i32, i32
  }
  func.func @transform_2(%arg0: i32) -> (i32, i32) {
    %c0_i32 = arith.constant 0 : i32
    %c0_i32_0 = arith.constant 0 : i32
    %c0_i32_1 = arith.constant 0 : i32
    return %c0_i32, %c0_i32_0 : i32, i32
  }
  func.func @transform_3(%arg0: i32) -> (i32, i32) {
    %c0_i32 = arith.constant 0 : i32
    %c0_i32_0 = arith.constant 0 : i32
    %c0_i32_1 = arith.constant 0 : i32
    return %c0_i32, %c0_i32_0 : i32, i32
  }
  func.func @transform_4(%arg0: i32) -> (i32, i32) {
    %c0_i32 = arith.constant 0 : i32
    %c0_i32_0 = arith.constant 0 : i32
    %c0_i32_1 = arith.constant 0 : i32
    return %c0_i32, %c0_i32_0 : i32, i32
  }
  func.func @transform_5(%arg0: i32) -> (i32, i32) {
    %c0_i32 = arith.constant 0 : i32
    %c0_i32_0 = arith.constant 0 : i32
    %c0_i32_1 = arith.constant 0 : i32
    return %c0_i32, %c0_i32_0 : i32, i32
  }
  func.func @transform_6(%arg0: i32) -> (i32, i32) {
    %c0_i32 = arith.constant 0 : i32
    %c0_i32_0 = arith.constant 0 : i32
    %c0_i32_1 = arith.constant 0 : i32
    return %c0_i32, %c0_i32_0 : i32, i32
  }
  func.func @transform_7(%arg0: i32) -> (i32, i32) {
    %c0_i32 = arith.constant 0 : i32
    %c0_i32_0 = arith.constant 0 : i32
    %c0_i32_1 = arith.constant 0 : i32
    return %c0_i32, %c0_i32_0 : i32, i32
  }
  func.func @transform_8(%arg0: i32) -> (i32, i32) {
    %c0_i32 = arith.constant 0 : i32
    %c0_i32_0 = arith.constant 0 : i32
    %c0_i32_1 = arith.constant 0 : i32
    return %c0_i32, %c0_i32_0 : i32, i32
  }
  func.func @transform_9(%arg0: i32) -> (i32, i32) {
    %c0_i32 = arith.constant 0 : i32
    %c0_i32_0 = arith.constant 0 : i32
    %c0_i32_1 = arith.constant 0 : i32
    return %c0_i32, %c0_i32_0 : i32, i32
  }
  func.func @transform_10(%arg0: i32) -> (i32, i32) {
    %c0_i32 = arith.constant 0 : i32
    %c0_i32_0 = arith.constant 0 : i32
    %c0_i32_1 = arith.constant 0 : i32
    return %c0_i32, %c0_i32_0 : i32, i32
  }
  func.func @transform_11(%arg0: i32) -> (i32, i32) {
    %c0_i32 = arith.constant 0 : i32
    %c0_i32_0 = arith.constant 0 : i32
    %c0_i32_1 = arith.constant 0 : i32
    return %c0_i32, %c0_i32_0 : i32, i32
  }
  func.func @transform_12(%arg0: i32) -> (i32, i32) {
    %c0_i32 = arith.constant 0 : i32
    %c0_i32_0 = arith.constant 0 : i32
    %c0_i32_1 = arith.constant 0 : i32
    return %c0_i32, %c0_i32_0 : i32, i32
  }
  func.func @transform_13(%arg0: i32) -> (i32, i32) {
    %c0_i32 = arith.constant 0 : i32
    %c0_i32_0 = arith.constant 0 : i32
    return %arg0, %c0_i32 : i32, i32
  }
  func.func @transform_14(%arg0: i32) -> (i32, i32) {
    %c0_i32 = arith.constant 0 : i32
    %c0_i32_0 = arith.constant 0 : i32
    return %arg0, %c0_i32 : i32, i32
  }
  func.func @transform_15(%arg0: i32) -> (i32, i32) {
    %c0_i32 = arith.constant 0 : i32
    %c0_i32_0 = arith.constant 0 : i32
    return %arg0, %c0_i32 : i32, i32
  }
}

</mosaic_0001>

<llo_original>
// kernel: cbm_forward.1
$region0: #{cbm_forward.1}
  #allocation0 [shape = 'u32[]', space=smem, size = 0x4, offset = 0x4, fixed_abs, tag = 'smem constant byte address 0x4 - core index']
  #allocation1 [shape = 'u32[144,128]{1,0:T(1,128)}', space=vmem, size = 0x12000, scoped, tag = 'internal scratch']
  %s0 = inlined_call_operand.vmem [shape: f32[8,32], index: 0, kind: input, shape index: {}]
  %s1 = inlined_call_operand.vmem [shape: bf16[32,256], index: 1, kind: input, shape index: {}]
  %s2 = inlined_call_operand.vmem [shape: f32[1,256], index: 2, kind: input, shape index: {}]
  %s3 = inlined_call_operand.vmem [shape: bf16[256,256], index: 3, kind: input, shape index: {}]
  %s4 = inlined_call_operand.vmem [shape: f32[1,256], index: 4, kind: input, shape index: {}]
  %s5 = inlined_call_operand.vmem [shape: bf16[256,256], index: 5, kind: input, shape index: {}]
  %s6 = inlined_call_operand.vmem [shape: f32[1,256], index: 6, kind: input, shape index: {}]
  %s7 = inlined_call_operand.vmem [shape: bf16[256,128], index: 7, kind: input, shape index: {}]
  %s8 = inlined_call_operand.vmem [shape: f32[1,128], index: 8, kind: input, shape index: {}]
  %s9 = inlined_call_operand.vmem [shape: bf16[128,128], index: 9, kind: input, shape index: {}]
  %s10 = inlined_call_operand.vmem [shape: f32[1,128], index: 10, kind: input, shape index: {}]
  %s11 = inlined_call_operand.vmem [shape: bf16[128,128], index: 11, kind: input, shape index: {}]
  %s12 = inlined_call_operand.vmem [shape: f32[1,128], index: 12, kind: input, shape index: {}]
  %s13 = inlined_call_operand.hbm [shape: f32[8,128], index: 13, kind: output, shape index: {0}]
  %s14 = inlined_call_operand.hbm [shape: f32[8,128], index: 14, kind: output, shape index: {1}]
  %s15 = inlined_call_operand.hbm [shape: f32[8,128], index: 15, kind: output, shape index: {2}]
  %16 = xla_tuple %s13, %s14, %s15
  %s17 = sld [smem:[#allocation0]]
  $region78: #{cbm_forward.1} parent=0
    _
  %s19 = ssub.s32 1, %s17
  %s20 = scalar_select 0, %s19, %s17
  $region1: #{cbm_forward.1} parent=0
    #allocation2 [shape = 'u8[4096]{0}', space=vmem, size = 0x1000, scoped, tag = 'output window, operand 0, single buffered']
    #allocation3 [shape = 's32[1]{0}', space=sflag, size = 0x4, scoped, tag = 'scoped memory for cbm_forward.1']
    #allocation4 [shape = 'u8[4096]{0}', space=vmem, size = 0x1000, scoped, tag = 'output window, operand 1, single buffered']
    #allocation5 [shape = 's32[1]{0}', space=sflag, size = 0x4, scoped, tag = 'scoped memory for cbm_forward.1']
    #allocation6 [shape = 'u8[4096]{0}', space=vmem, size = 0x1000, scoped, tag = 'output window, operand 2, single buffered']
    %21 = vsyncpa [#allocation3], 0
    %22 = vsyncpa [#allocation5], 0
    // Predicated region
    $region2: #{cbm_forward.1} parent=1 // pred_check
      _
    $region3: #{cbm_forward.1} parent=1 // pred_check_branch
      %24 = sbr.rel (0) target = $region5
    $region4: #{cbm_forward.1} parent=1 // pred_region
      _
    $region5: #{cbm_forward.1} parent=1 // pred_fallthru
      _
    // Predicated region
    $region6: #{cbm_forward.1} parent=1 // pred_check
      _
    $region7: #{cbm_forward.1} parent=1 // pred_check_branch
      %26 = sbr.rel (0) target = $region9
    $region8: #{cbm_forward.1} parent=1 // pred_region
      _
    $region9: #{cbm_forward.1} parent=1 // pred_fallthru
      _
    // Predicated region
    $region10: #{cbm_forward.1} parent=1 // pred_check
      _
    $region11: #{cbm_forward.1} parent=1 // pred_check_branch
      %28 = sbr.rel (0) target = $region13
    $region12: #{cbm_forward.1} parent=1 // pred_region
      _
    $region13: #{cbm_forward.1} parent=1 // pred_fallthru
      _
    // Predicated region
    $region14: #{cbm_forward.1} parent=1 // pred_check
      _
    $region15: #{cbm_forward.1} parent=1 // pred_check_branch
      %30 = sbr.rel (0) target = $region17
    $region16: #{cbm_forward.1} parent=1 // pred_region
      _
    $region17: #{cbm_forward.1} parent=1 // pred_fallthru
      _
    // Predicated region
    $region18: #{cbm_forward.1} parent=1 // pred_check
      _
    $region19: #{cbm_forward.1} parent=1 // pred_check_branch
      %32 = sbr.rel (0) target = $region21
    $region20: #{cbm_forward.1} parent=1 // pred_region
      _
    $region21: #{cbm_forward.1} parent=1 // pred_fallthru
      _
    // Predicated region
    $region22: #{cbm_forward.1} parent=1 // pred_check
      _
    $region23: #{cbm_forward.1} parent=1 // pred_check_branch
      %34 = sbr.rel (0) target = $region25
    $region24: #{cbm_forward.1} parent=1 // pred_region
      _
    $region25: #{cbm_forward.1} parent=1 // pred_fallthru
      _
    // Predicated region
    $region26: #{cbm_forward.1} parent=1 // pred_check
      _
    $region27: #{cbm_forward.1} parent=1 // pred_check_branch
      %36 = sbr.rel (0) target = $region29
    $region28: #{cbm_forward.1} parent=1 // pred_region
      _
    $region29: #{cbm_forward.1} parent=1 // pred_fallthru
      _
    // Predicated region
    $region30: #{cbm_forward.1} parent=1 // pred_check
      _
    $region31: #{cbm_forward.1} parent=1 // pred_check_branch
      %38 = sbr.rel (0) target = $region33
    $region32: #{cbm_forward.1} parent=1 // pred_region
      _
    $region33: #{cbm_forward.1} parent=1 // pred_fallthru
      _
    // Predicated region
    $region34: #{cbm_forward.1} parent=1 // pred_check
      _
    $region35: #{cbm_forward.1} parent=1 // pred_check_branch
      %40 = sbr.rel (0) target = $region37
    $region36: #{cbm_forward.1} parent=1 // pred_region
      _
    $region37: #{cbm_forward.1} parent=1 // pred_fallthru
      _
    // Predicated region
    $region38: #{cbm_forward.1} parent=1 // pred_check
      _
    $region39: #{cbm_forward.1} parent=1 // pred_check_branch
      %42 = sbr.rel (0) target = $region41
    $region40: #{cbm_forward.1} parent=1 // pred_region
      _
    $region41: #{cbm_forward.1} parent=1 // pred_fallthru
      _
    // Predicated region
    $region42: #{cbm_forward.1} parent=1 // pred_check
      _
    $region43: #{cbm_forward.1} parent=1 // pred_check_branch
      %44 = sbr.rel (0) target = $region45
    $region44: #{cbm_forward.1} parent=1 // pred_region
      _
    $region45: #{cbm_forward.1} parent=1 // pred_fallthru
      _
    // Predicated region
    $region46: #{cbm_forward.1} parent=1 // pred_check
      _
    $region47: #{cbm_forward.1} parent=1 // pred_check_branch
      %46 = sbr.rel (0) target = $region49
    $region48: #{cbm_forward.1} parent=1 // pred_region
      _
    $region49: #{cbm_forward.1} parent=1 // pred_fallthru
      _
    // Predicated region
    $region50: #{cbm_forward.1} parent=1 // pred_check
      _
    $region51: #{cbm_forward.1} parent=1 // pred_check_branch
      %48 = sbr.rel (0) target = $region53
    $region52: #{cbm_forward.1} parent=1 // pred_region
      _
    $region53: #{cbm_forward.1} parent=1 // pred_fallthru
      _
    %v50 = vld [vmem:[%s0] sm:$0xff]
    %v51 = vpack.c.bf16 %v50, %v50
    %v52 = vld [vmem:[%s1] sm:$0xff]
    %v53 = vld [vmem:[%s1 + $0x8] sm:$0xff]
    %v54 = vld [vmem:[%s1 + $0x10] sm:$0xff]
    %v55 = vld [vmem:[%s1 + $0x18] sm:$0xff]
    %v56 = vld [vmem:[%s2] sm:$0x3]
    %v58 = vlaneseq
    %v59 = vshrl.u32 %v58, 7
    %v60 = vsub.s32 0, %v59
    %v61 = vrot.slane %v56, %v60
    %v62 = vlaneseq
    %v63 = vshrl.u32 %v62, 7
    %v64 = vsub.s32 1, %v63
    %v65 = vrot.slane %v56, %v64
    %v72 = vunpack.c.l.b16 %v52
    %v73 = vunpack.c.h.b16 %v52
    %v74 = vunpack.c.l.b16 %v53
    %v75 = vunpack.c.h.b16 %v53
    %v76 = vunpack.c.l.b16 %v54
    %v77 = vunpack.c.h.b16 %v54
    %v78 = vunpack.c.l.b16 %v55
    %v79 = vunpack.c.h.b16 %v55
    %v80 = vpack.c.b16 %v74, %v72
    %v81 = vpack.c.b16 %v75, %v73
    %v82 = vpack.c.b16 %v78, %v76
    %v83 = vpack.c.b16 %v79, %v77
    %vm88 = vcmask 261120
    %v90 = vsel %vm88, %v51, 0
    %92 = vmatprep.subr.bf16.mxu0 %v81
    %93 = vmatpush1.bf16.msra.mxu0 %v80
    %94 = vmatprep.subr.bf16.mxu0 %v83
    %95 = vmatpush1.bf16.msra.mxu0 %v82
    %96 = vmatprep.subr.bf16.mxu0 0
    %97 = vmatpush1.bf16.msra.mxu0 0
    %98 = vmatprep.subr.bf16.mxu0 0
    %99 = vmatpush1.bf16.msra.mxu0 0
    %100 = vmatprep.subr.bf16.mxu0 0
    %101 = vmatpush1.bf16.msra.mxu0 0
    %102 = vmatprep.subr.bf16.mxu0 0
    %103 = vmatpush1.bf16.msra.mxu0 0
    %104 = vmatprep.subr.bf16.mxu0 0
    %105 = vmatpush1.bf16.msra.mxu0 0
    %106 = vmatprep.subr.bf16.mxu0 0
    %107 = vmatpush1.bf16.msra.mxu0 0
    %108 = vmatprep.subr.bf16.mxu0 0
    %109 = vmatpush1.bf16.msra.mxu0 0
    %110 = vmatprep.subr.bf16.mxu0 0
    %111 = vmatpush1.bf16.msra.mxu0 0
    %112 = vmatprep.subr.bf16.mxu0 0
    %113 = vmatpush1.bf16.msra.mxu0 0
    %114 = vmatprep.subr.bf16.mxu0 0
    %115 = vmatpush1.bf16.msra.mxu0 0
    %116 = vmatprep.subr.bf16.mxu0 0
    %117 = vmatpush1.bf16.msra.mxu0 0
    %118 = vmatprep.subr.bf16.mxu0 0
    %119 = vmatpush1.bf16.msra.mxu0 0
    %120 = vmatprep.subr.bf16.mxu0 0
    %121 = vmatpush1.bf16.msra.mxu0 0
    %122 = vmatprep.subr.bf16.mxu0 0
    %123 = vmatpush1.bf16.msra.mxu0 0
    %124 = vmatprep.mubr.bf16.mxu0 0
    %125 = vmatmul.mubr.bf16.gmra.mrb[0].mxu0 %v90
    %v126 = vpop.f32.mrb[0].mxu0
    %v127 = vadd.f32 %v61, %v126
    %v128 = vpop.f32.mrb[0].mxu0
    %v129 = vadd.f32 %v65, %v128
    %v130 = vpop.f32.mrb[0].mxu0
    %v131 = vpop.f32.mrb[0].mxu0
    %132 = vdwg.mxu0
    %v133 = vmax.f32 %v127, 0.0
    %v134 = vmax.f32 %v129, 0.0
    %v135 = vpack.c.bf16 %v133, %v133
    %v136 = vpack.c.bf16 %v134, %v134
    %v137 = vld [vmem:[%s3] sm:$0xff]
    %v138 = vld [vmem:[%s3 + $0x8] sm:$0xff]
    %v139 = vld [vmem:[%s3 + $0x10] sm:$0xff]
    %v140 = vld [vmem:[%s3 + $0x18] sm:$0xff]
    %v141 = vld [vmem:[%s3 + $0x20] sm:$0xff]
    %v142 = vld [vmem:[%s3 + $0x28] sm:$0xff]
    %v143 = vld [vmem:[%s3 + $0x30] sm:$0xff]
    %v144 = vld [vmem:[%s3 + $0x38] sm:$0xff]
    %v145 = vld [vmem:[%s3 + $0x40] sm:$0xff]
    %v146 = vld [vmem:[%s3 + $0x48] sm:$0xff]
    %v147 = vld [vmem:[%s3 + $0x50] sm:$0xff]
    %v148 = vld [vmem:[%s3 + $0x58] sm:$0xff]
    %v149 = vld [vmem:[%s3 + $0x60] sm:$0xff]
    %v150 = vld [vmem:[%s3 + $0x68] sm:$0xff]
    %v151 = vld [vmem:[%s3 + $0x70] sm:$0xff]
    %v152 = vld [vmem:[%s3 + $0x78] sm:$0xff]
    %v153 = vld [vmem:[%s3 + $0x80] sm:$0xff]
    %v154 = vld [vmem:[%s3 + $0x88] sm:$0xff]
    %v155 = vld [vmem:[%s3 + $0x90] sm:$0xff]
    %v156 = vld [vmem:[%s3 + $0x98] sm:$0xff]
    %v157 = vld [vmem:[%s3 + $0xa0] sm:$0xff]
    %v158 = vld [vmem:[%s3 + $0xa8] sm:$0xff]
    %v159 = vld [vmem:[%s3 + $0xb0] sm:$0xff]
    %v160 = vld [vmem:[%s3 + $0xb8] sm:$0xff]
    %v161 = vld [vmem:[%s3 + $0xc0] sm:$0xff]
    %v162 = vld [vmem:[%s3 + $0xc8] sm:$0xff]
    %v163 = vld [vmem:[%s3 + $0xd0] sm:$0xff]
    %v164 = vld [vmem:[%s3 + $0xd8] sm:$0xff]
    %v165 = vld [vmem:[%s3 + $0xe0] sm:$0xff]
    %v166 = vld [vmem:[%s3 + $0xe8] sm:$0xff]
    %v167 = vld [vmem:[%s3 + $0xf0] sm:$0xff]
    %v168 = vld [vmem:[%s3 + $0xf8] sm:$0xff]
    %v169 = vld [vmem:[%s4] sm:$0x3]
    %v171 = vlaneseq
    %v172 = vshrl.u32 %v171, 7
    %v173 = vsub.s32 0, %v172
    %v174 = vrot.slane %v169, %v173
    %v175 = vlaneseq
    %v176 = vshrl.u32 %v175, 7
    %v177 = vsub.s32 1, %v176
    %v178 = vrot.slane %v169, %v177
    %v213 = vunpack.c.l.b16 %v137
    %v214 = vunpack.c.h.b16 %v137
    %v215 = vunpack.c.l.b16 %v138
    %v216 = vunpack.c.h.b16 %v138
    %v217 = vunpack.c.l.b16 %v139
    %v218 = vunpack.c.h.b16 %v139
    %v219 = vunpack.c.l.b16 %v140
    %v220 = vunpack.c.h.b16 %v140
    %v221 = vunpack.c.l.b16 %v141
    %v222 = vunpack.c.h.b16 %v141
    %v223 = vunpack.c.l.b16 %v142
    %v224 = vunpack.c.h.b16 %v142
    %v225 = vunpack.c.l.b16 %v143
    %v226 = vunpack.c.h.b16 %v143
    %v227 = vunpack.c.l.b16 %v144
    %v228 = vunpack.c.h.b16 %v144
    %v229 = vunpack.c.l.b16 %v145
    %v230 = vunpack.c.h.b16 %v145
    %v231 = vunpack.c.l.b16 %v146
    %v232 = vunpack.c.h.b16 %v146
    %v233 = vunpack.c.l.b16 %v147
    %v234 = vunpack.c.h.b16 %v147
    %v235 = vunpack.c.l.b16 %v148
    %v236 = vunpack.c.h.b16 %v148
    %v237 = vunpack.c.l.b16 %v149
    %v238 = vunpack.c.h.b16 %v149
    %v239 = vunpack.c.l.b16 %v150
    %v240 = vunpack.c.h.b16 %v150
    %v241 = vunpack.c.l.b16 %v151
    %v242 = vunpack.c.h.b16 %v151
    %v243 = vunpack.c.l.b16 %v152
    %v244 = vunpack.c.h.b16 %v152
    %v245 = vunpack.c.l.b16 %v153
    %v246 = vunpack.c.h.b16 %v153
    %v247 = vunpack.c.l.b16 %v154
    %v248 = vunpack.c.h.b16 %v154
    %v249 = vunpack.c.l.b16 %v155
    %v250 = vunpack.c.h.b16 %v155
    %v251 = vunpack.c.l.b16 %v156
    %v252 = vunpack.c.h.b16 %v156
    %v253 = vunpack.c.l.b16 %v157
    %v254 = vunpack.c.h.b16 %v157
    %v255 = vunpack.c.l.b16 %v158
    %v256 = vunpack.c.h.b16 %v158
    %v257 = vunpack.c.l.b16 %v159
    %v258 = vunpack.c.h.b16 %v159
    %v259 = vunpack.c.l.b16 %v160
    %v260 = vunpack.c.h.b16 %v160
    %v261 = vunpack.c.l.b16 %v161
    %v262 = vunpack.c.h.b16 %v161
    %v263 = vunpack.c.l.b16 %v162
    %v264 = vunpack.c.h.b16 %v162
    %v265 = vunpack.c.l.b16 %v163
    %v266 = vunpack.c.h.b16 %v163
    %v267 = vunpack.c.l.b16 %v164
    %v268 = vunpack.c.h.b16 %v164
    %v269 = vunpack.c.l.b16 %v165
    %v270 = vunpack.c.h.b16 %v165
    %v271 = vunpack.c.l.b16 %v166
    %v272 = vunpack.c.h.b16 %v166
    %v273 = vunpack.c.l.b16 %v167
    %v274 = vunpack.c.h.b16 %v167
    %v275 = vunpack.c.l.b16 %v168
    %v276 = vunpack.c.h.b16 %v168
    %v277 = vpack.c.b16 %v215, %v213
    %v278 = vpack.c.b16 %v216, %v214
    %v279 = vpack.c.b16 %v219, %v217
    %v280 = vpack.c.b16 %v220, %v218
    %v281 = vpack.c.b16 %v223, %v221
    %v282 = vpack.c.b16 %v224, %v222
    %v283 = vpack.c.b16 %v227, %v225
    %v284 = vpack.c.b16 %v228, %v226
    %v285 = vpack.c.b16 %v231, %v229
    %v286 = vpack.c.b16 %v232, %v230
    %v287 = vpack.c.b16 %v235, %v233
    %v288 = vpack.c.b16 %v236, %v234
    %v289 = vpack.c.b16 %v239, %v237
    %v290 = vpack.c.b16 %v240, %v238
    %v291 = vpack.c.b16 %v243, %v241
    %v292 = vpack.c.b16 %v244, %v242
    %v293 = vpack.c.b16 %v247, %v245
    %v294 = vpack.c.b16 %v248, %v246
    %v295 = vpack.c.b16 %v251, %v249
    %v296 = vpack.c.b16 %v252, %v250
    %v297 = vpack.c.b16 %v255, %v253
    %v298 = vpack.c.b16 %v256, %v254
    %v299 = vpack.c.b16 %v259, %v257
    %v300 = vpack.c.b16 %v260, %v258
    %v301 = vpack.c.b16 %v263, %v261
    %v302 = vpack.c.b16 %v264, %v262
    %v303 = vpack.c.b16 %v267, %v265
    %v304 = vpack.c.b16 %v268, %v266
    %v305 = vpack.c.b16 %v271, %v269
    %v306 = vpack.c.b16 %v272, %v270
    %v307 = vpack.c.b16 %v275, %v273
    %v308 = vpack.c.b16 %v276, %v274
    %341 = vmatprep.subr.bf16.mxu0 %v278
    %342 = vmatpush1.bf16.msra.mxu0 %v277
    %343 = vmatprep.subr.bf16.mxu0 %v280
    %344 = vmatpush1.bf16.msra.mxu0 %v279
    %345 = vmatprep.subr.bf16.mxu0 %v282
    %346 = vmatpush1.bf16.msra.mxu0 %v281
    %347 = vmatprep.subr.bf16.mxu0 %v284
    %348 = vmatpush1.bf16.msra.mxu0 %v283
    %349 = vmatprep.subr.bf16.mxu0 %v286
    %350 = vmatpush1.bf16.msra.mxu0 %v285
    %351 = vmatprep.subr.bf16.mxu0 %v288
    %352 = vmatpush1.bf16.msra.mxu0 %v287
    %353 = vmatprep.subr.bf16.mxu0 %v290
    %354 = vmatpush1.bf16.msra.mxu0 %v289
    %355 = vmatprep.subr.bf16.mxu0 %v292
    %356 = vmatpush1.bf16.msra.mxu0 %v291
    %357 = vmatprep.subr.bf16.mxu0 %v294
    %358 = vmatpush1.bf16.msra.mxu0 %v293
    %359 = vmatprep.subr.bf16.mxu0 %v296
    %360 = vmatpush1.bf16.msra.mxu0 %v295
    %361 = vmatprep.subr.bf16.mxu0 %v298
    %362 = vmatpush1.bf16.msra.mxu0 %v297
    %363 = vmatprep.subr.bf16.mxu0 %v300
    %364 = vmatpush1.bf16.msra.mxu0 %v299
    %365 = vmatprep.subr.bf16.mxu0 %v302
    %366 = vmatpush1.bf16.msra.mxu0 %v301
    %367 = vmatprep.subr.bf16.mxu0 %v304
    %368 = vmatpush1.bf16.msra.mxu0 %v303
    %369 = vmatprep.subr.bf16.mxu0 %v306
    %370 = vmatpush1.bf16.msra.mxu0 %v305
    %371 = vmatprep.subr.bf16.mxu0 %v308
    %372 = vmatpush1.bf16.msra.mxu0 %v307
    %373 = vmatprep.mubr.bf16.mxu0 %v136
    %374 = vmatmul.mubr.bf16.gmra.mrb[0].mxu0 %v135
    %v375 = vpop.f32.mrb[0].mxu0
    %v376 = vadd.f32 %v174, %v375
    %v377 = vpop.f32.mrb[0].mxu0
    %v378 = vadd.f32 %v178, %v377
    %v379 = vpop.f32.mrb[0].mxu0
    %v380 = vpop.f32.mrb[0].mxu0
    %381 = vdwg.mxu0
    %v382 = vmax.f32 %v376, 0.0
    %v383 = vmax.f32 %v378, 0.0
    %v384 = vpack.c.bf16 %v382, %v382
    %v385 = vpack.c.bf16 %v383, %v383
    %v386 = vld [vmem:[%s5] sm:$0xff]
    %v387 = vld [vmem:[%s5 + $0x8] sm:$0xff]
    %v388 = vld [vmem:[%s5 + $0x10] sm:$0xff]
    %v389 = vld [vmem:[%s5 + $0x18] sm:$0xff]
    %v390 = vld [vmem:[%s5 + $0x20] sm:$0xff]
    %v391 = vld [vmem:[%s5 + $0x28] sm:$0xff]
    %v392 = vld [vmem:[%s5 + $0x30] sm:$0xff]
    %v393 = vld [vmem:[%s5 + $0x38] sm:$0xff]
    %v394 = vld [vmem:[%s5 + $0x40] sm:$0xff]
    %v395 = vld [vmem:[%s5 + $0x48] sm:$0xff]
    %v396 = vld [vmem:[%s5 + $0x50] sm:$0xff]
    %v397 = vld [vmem:[%s5 + $0x58] sm:$0xff]
    %v398 = vld [vmem:[%s5 + $0x60] sm:$0xff]
    %v399 = vld [vmem:[%s5 + $0x68] sm:$0xff]
    %v400 = vld [vmem:[%s5 + $0x70] sm:$0xff]
    %v401 = vld [vmem:[%s5 + $0x78] sm:$0xff]
    %v402 = vld [vmem:[%s5 + $0x80] sm:$0xff]
    %v403 = vld [vmem:[%s5 + $0x88] sm:$0xff]
    %v404 = vld [vmem:[%s5 + $0x90] sm:$0xff]
    %v405 = vld [vmem:[%s5 + $0x98] sm:$0xff]
    %v406 = vld [vmem:[%s5 + $0xa0] sm:$0xff]
    %v407 = vld [vmem:[%s5 + $0xa8] sm:$0xff]
    %v408 = vld [vmem:[%s5 + $0xb0] sm:$0xff]
    %v409 = vld [vmem:[%s5 + $0xb8] sm:$0xff]
    %v410 = vld [vmem:[%s5 + $0xc0] sm:$0xff]
    %v411 = vld [vmem:[%s5 + $0xc8] sm:$0xff]
    %v412 = vld [vmem:[%s5 + $0xd0] sm:$0xff]
    %v413 = vld [vmem:[%s5 + $0xd8] sm:$0xff]
    %v414 = vld [vmem:[%s5 + $0xe0] sm:$0xff]
    %v415 = vld [vmem:[%s5 + $0xe8] sm:$0xff]
    %v416 = vld [vmem:[%s5 + $0xf0] sm:$0xff]
    %v417 = vld [vmem:[%s5 + $0xf8] sm:$0xff]
    %v418 = vld [vmem:[%s6] sm:$0x3]
    %v420 = vlaneseq
    %v421 = vshrl.u32 %v420, 7
    %v422 = vsub.s32 0, %v421
    %v423 = vrot.slane %v418, %v422
    %v424 = vlaneseq
    %v425 = vshrl.u32 %v424, 7
    %v426 = vsub.s32 1, %v425
    %v427 = vrot.slane %v418, %v426
    %v462 = vunpack.c.l.b16 %v386
    %v463 = vunpack.c.h.b16 %v386
    %v464 = vunpack.c.l.b16 %v387
    %v465 = vunpack.c.h.b16 %v387
    %v466 = vunpack.c.l.b16 %v388
    %v467 = vunpack.c.h.b16 %v388
    %v468 = vunpack.c.l.b16 %v389
    %v469 = vunpack.c.h.b16 %v389
    %v470 = vunpack.c.l.b16 %v390
    %v471 = vunpack.c.h.b16 %v390
    %v472 = vunpack.c.l.b16 %v391
    %v473 = vunpack.c.h.b16 %v391
    %v474 = vunpack.c.l.b16 %v392
    %v475 = vunpack.c.h.b16 %v392
    %v476 = vunpack.c.l.b16 %v393
    %v477 = vunpack.c.h.b16 %v393
    %v478 = vunpack.c.l.b16 %v394
    %v479 = vunpack.c.h.b16 %v394
    %v480 = vunpack.c.l.b16 %v395
    %v481 = vunpack.c.h.b16 %v395
    %v482 = vunpack.c.l.b16 %v396
    %v483 = vunpack.c.h.b16 %v396
    %v484 = vunpack.c.l.b16 %v397
    %v485 = vunpack.c.h.b16 %v397
    %v486 = vunpack.c.l.b16 %v398
    %v487 = vunpack.c.h.b16 %v398
    %v488 = vunpack.c.l.b16 %v399
    %v489 = vunpack.c.h.b16 %v399
    %v490 = vunpack.c.l.b16 %v400
    %v491 = vunpack.c.h.b16 %v400
    %v492 = vunpack.c.l.b16 %v401
    %v493 = vunpack.c.h.b16 %v401
    %v494 = vunpack.c.l.b16 %v402
    %v495 = vunpack.c.h.b16 %v402
    %v496 = vunpack.c.l.b16 %v403
    %v497 = vunpack.c.h.b16 %v403
    %v498 = vunpack.c.l.b16 %v404
    %v499 = vunpack.c.h.b16 %v404
    %v500 = vunpack.c.l.b16 %v405
    %v501 = vunpack.c.h.b16 %v405
    %v502 = vunpack.c.l.b16 %v406
    %v503 = vunpack.c.h.b16 %v406
    %v504 = vunpack.c.l.b16 %v407
    %v505 = vunpack.c.h.b16 %v407
    %v506 = vunpack.c.l.b16 %v408
    %v507 = vunpack.c.h.b16 %v408
    %v508 = vunpack.c.l.b16 %v409
    %v509 = vunpack.c.h.b16 %v409
    %v510 = vunpack.c.l.b16 %v410
    %v511 = vunpack.c.h.b16 %v410
    %v512 = vunpack.c.l.b16 %v411
    %v513 = vunpack.c.h.b16 %v411
    %v514 = vunpack.c.l.b16 %v412
    %v515 = vunpack.c.h.b16 %v412
    %v516 = vunpack.c.l.b16 %v413
    %v517 = vunpack.c.h.b16 %v413
    %v518 = vunpack.c.l.b16 %v414
    %v519 = vunpack.c.h.b16 %v414
    %v520 = vunpack.c.l.b16 %v415
    %v521 = vunpack.c.h.b16 %v415
    %v522 = vunpack.c.l.b16 %v416
    %v523 = vunpack.c.h.b16 %v416
    %v524 = vunpack.c.l.b16 %v417
    %v525 = vunpack.c.h.b16 %v417
    %v526 = vpack.c.b16 %v464, %v462
    %v527 = vpack.c.b16 %v465, %v463
    %v528 = vpack.c.b16 %v468, %v466
    %v529 = vpack.c.b16 %v469, %v467
    %v530 = vpack.c.b16 %v472, %v470
    %v531 = vpack.c.b16 %v473, %v471
    %v532 = vpack.c.b16 %v476, %v474
    %v533 = vpack.c.b16 %v477, %v475
    %v534 = vpack.c.b16 %v480, %v478
    %v535 = vpack.c.b16 %v481, %v479
    %v536 = vpack.c.b16 %v484, %v482
    %v537 = vpack.c.b16 %v485, %v483
    %v538 = vpack.c.b16 %v488, %v486
    %v539 = vpack.c.b16 %v489, %v487
    %v540 = vpack.c.b16 %v492, %v490
    %v541 = vpack.c.b16 %v493, %v491
    %v542 = vpack.c.b16 %v496, %v494
    %v543 = vpack.c.b16 %v497, %v495
    %v544 = vpack.c.b16 %v500, %v498
    %v545 = vpack.c.b16 %v501, %v499
    %v546 = vpack.c.b16 %v504, %v502
    %v547 = vpack.c.b16 %v505, %v503
    %v548 = vpack.c.b16 %v508, %v506
    %v549 = vpack.c.b16 %v509, %v507
    %v550 = vpack.c.b16 %v512, %v510
    %v551 = vpack.c.b16 %v513, %v511
    %v552 = vpack.c.b16 %v516, %v514
    %v553 = vpack.c.b16 %v517, %v515
    %v554 = vpack.c.b16 %v520, %v518
    %v555 = vpack.c.b16 %v521, %v519
    %v556 = vpack.c.b16 %v524, %v522
    %v557 = vpack.c.b16 %v525, %v523
    %590 = vmatprep.subr.bf16.mxu0 %v527
    %591 = vmatpush1.bf16.msra.mxu0 %v526
    %592 = vmatprep.subr.bf16.mxu0 %v529
    %593 = vmatpush1.bf16.msra.mxu0 %v528
    %594 = vmatprep.subr.bf16.mxu0 %v531
    %595 = vmatpush1.bf16.msra.mxu0 %v530
    %596 = vmatprep.subr.bf16.mxu0 %v533
    %597 = vmatpush1.bf16.msra.mxu0 %v532
    %598 = vmatprep.subr.bf16.mxu0 %v535
    %599 = vmatpush1.bf16.msra.mxu0 %v534
    %600 = vmatprep.subr.bf16.mxu0 %v537
    %601 = vmatpush1.bf16.msra.mxu0 %v536
    %602 = vmatprep.subr.bf16.mxu0 %v539
    %603 = vmatpush1.bf16.msra.mxu0 %v538
    %604 = vmatprep.subr.bf16.mxu0 %v541
    %605 = vmatpush1.bf16.msra.mxu0 %v540
    %606 = vmatprep.subr.bf16.mxu0 %v543
    %607 = vmatpush1.bf16.msra.mxu0 %v542
    %608 = vmatprep.subr.bf16.mxu0 %v545
    %609 = vmatpush1.bf16.msra.mxu0 %v544
    %610 = vmatprep.subr.bf16.mxu0 %v547
    %611 = vmatpush1.bf16.msra.mxu0 %v546
    %612 = vmatprep.subr.bf16.mxu0 %v549
    %613 = vmatpush1.bf16.msra.mxu0 %v548
    %614 = vmatprep.subr.bf16.mxu0 %v551
    %615 = vmatpush1.bf16.msra.mxu0 %v550
    %616 = vmatprep.subr.bf16.mxu0 %v553
    %617 = vmatpush1.bf16.msra.mxu0 %v552
    %618 = vmatprep.subr.bf16.mxu0 %v555
    %619 = vmatpush1.bf16.msra.mxu0 %v554
    %620 = vmatprep.subr.bf16.mxu0 %v557
    %621 = vmatpush1.bf16.msra.mxu0 %v556
    %622 = vmatprep.mubr.bf16.mxu0 %v385
    %623 = vmatmul.mubr.bf16.gmra.mrb[0].mxu0 %v384
    %v624 = vpop.f32.mrb[0].mxu0
    %v625 = vadd.f32 %v423, %v624
    %v626 = vpop.f32.mrb[0].mxu0
    %v627 = vadd.f32 %v427, %v626
    %v628 = vpop.f32.mrb[0].mxu0
    %v629 = vpop.f32.mrb[0].mxu0
    %630 = vdwg.mxu0
    %v631 = vmax.f32 %v625, 0.0
    %v632 = vmax.f32 %v627, 0.0
    %v633 = vpack.c.bf16 %v631, %v631
    %v634 = vpack.c.bf16 %v632, %v632
    %v635 = vld [vmem:[%s7] sm:$0xf]
    %v636 = vld [vmem:[%s7 + $0x4] sm:$0xf]
    %v637 = vld [vmem:[%s7 + $0x8] sm:$0xf]
    %v638 = vld [vmem:[%s7 + $0xc] sm:$0xf]
    %v639 = vld [vmem:[%s7 + $0x10] sm:$0xf]
    %v640 = vld [vmem:[%s7 + $0x14] sm:$0xf]
    %v641 = vld [vmem:[%s7 + $0x18] sm:$0xf]
    %v642 = vld [vmem:[%s7 + $0x1c] sm:$0xf]
    %v643 = vld [vmem:[%s7 + $0x20] sm:$0xf]
    %v644 = vld [vmem:[%s7 + $0x24] sm:$0xf]
    %v645 = vld [vmem:[%s7 + $0x28] sm:$0xf]
    %v646 = vld [vmem:[%s7 + $0x2c] sm:$0xf]
    %v647 = vld [vmem:[%s7 + $0x30] sm:$0xf]
    %v648 = vld [vmem:[%s7 + $0x34] sm:$0xf]
    %v649 = vld [vmem:[%s7 + $0x38] sm:$0xf]
    %v650 = vld [vmem:[%s7 + $0x3c] sm:$0xf]
    %v651 = vld [vmem:[%s7 + $0x40] sm:$0xf]
    %v652 = vld [vmem:[%s7 + $0x44] sm:$0xf]
    %v653 = vld [vmem:[%s7 + $0x48] sm:$0xf]
    %v654 = vld [vmem:[%s7 + $0x4c] sm:$0xf]
    %v655 = vld [vmem:[%s7 + $0x50] sm:$0xf]
    %v656 = vld [vmem:[%s7 + $0x54] sm:$0xf]
    %v657 = vld [vmem:[%s7 + $0x58] sm:$0xf]
    %v658 = vld [vmem:[%s7 + $0x5c] sm:$0xf]
    %v659 = vld [vmem:[%s7 + $0x60] sm:$0xf]
    %v660 = vld [vmem:[%s7 + $0x64] sm:$0xf]
    %v661 = vld [vmem:[%s7 + $0x68] sm:$0xf]
    %v662 = vld [vmem:[%s7 + $0x6c] sm:$0xf]
    %v663 = vld [vmem:[%s7 + $0x70] sm:$0xf]
    %v664 = vld [vmem:[%s7 + $0x74] sm:$0xf]
    %v665 = vld [vmem:[%s7 + $0x78] sm:$0xf]
    %v666 = vld [vmem:[%s7 + $0x7c] sm:$0xf]
    %v667 = vld [vmem:[%s8] sm:$0x1]
    %v669 = vlaneseq
    %v670 = vshrl.u32 %v669, 7
    %v671 = vsub.s32 0, %v670
    %v672 = vrot.slane %v667, %v671
    %v706 = vunpack.c.l.b16 %v635
    %v707 = vunpack.c.l.b16 %v636
    %v708 = vunpack.c.l.b16 %v637
    %v709 = vunpack.c.l.b16 %v638
    %v710 = vunpack.c.l.b16 %v639
    %v711 = vunpack.c.l.b16 %v640
    %v712 = vunpack.c.l.b16 %v641
    %v713 = vunpack.c.l.b16 %v642
    %v714 = vunpack.c.l.b16 %v643
    %v715 = vunpack.c.l.b16 %v644
    %v716 = vunpack.c.l.b16 %v645
    %v717 = vunpack.c.l.b16 %v646
    %v718 = vunpack.c.l.b16 %v647
    %v719 = vunpack.c.l.b16 %v648
    %v720 = vunpack.c.l.b16 %v649
    %v721 = vunpack.c.l.b16 %v650
    %v722 = vunpack.c.l.b16 %v651
    %v723 = vunpack.c.l.b16 %v652
    %v724 = vunpack.c.l.b16 %v653
    %v725 = vunpack.c.l.b16 %v654
    %v726 = vunpack.c.l.b16 %v655
    %v727 = vunpack.c.l.b16 %v656
    %v728 = vunpack.c.l.b16 %v657
    %v729 = vunpack.c.l.b16 %v658
    %v730 = vunpack.c.l.b16 %v659
    %v731 = vunpack.c.l.b16 %v660
    %v732 = vunpack.c.l.b16 %v661
    %v733 = vunpack.c.l.b16 %v662
    %v734 = vunpack.c.l.b16 %v663
    %v735 = vunpack.c.l.b16 %v664
    %v736 = vunpack.c.l.b16 %v665
    %v737 = vunpack.c.l.b16 %v666
    %v738 = vpack.c.b16 %v707, %v706
    %v739 = vpack.c.b16 %v709, %v708
    %v740 = vpack.c.b16 %v711, %v710
    %v741 = vpack.c.b16 %v713, %v712
    %v742 = vpack.c.b16 %v715, %v714
    %v743 = vpack.c.b16 %v717, %v716
    %v744 = vpack.c.b16 %v719, %v718
    %v745 = vpack.c.b16 %v721, %v720
    %v746 = vpack.c.b16 %v723, %v722
    %v747 = vpack.c.b16 %v725, %v724
    %v748 = vpack.c.b16 %v727, %v726
    %v749 = vpack.c.b16 %v729, %v728
    %v750 = vpack.c.b16 %v731, %v730
    %v751 = vpack.c.b16 %v733, %v732
    %v752 = vpack.c.b16 %v735, %v734
    %v753 = vpack.c.b16 %v737, %v736
    %770 = vmatprep.subr.bf16.mxu0 0
    %771 = vmatpush1.bf16.msra.mxu0 %v738
    %772 = vmatprep.subr.bf16.mxu0 0
    %773 = vmatpush1.bf16.msra.mxu0 %v739
    %774 = vmatprep.subr.bf16.mxu0 0
    %775 = vmatpush1.bf16.msra.mxu0 %v740
    %776 = vmatprep.subr.bf16.mxu0 0
    %777 = vmatpush1.bf16.msra.mxu0 %v741
    %778 = vmatprep.subr.bf16.mxu0 0
    %779 = vmatpush1.bf16.msra.mxu0 %v742
    %780 = vmatprep.subr.bf16.mxu0 0
    %781 = vmatpush1.bf16.msra.mxu0 %v743
    %782 = vmatprep.subr.bf16.mxu0 0
    %783 = vmatpush1.bf16.msra.mxu0 %v744
    %784 = vmatprep.subr.bf16.mxu0 0
    %785 = vmatpush1.bf16.msra.mxu0 %v745
    %786 = vmatprep.subr.bf16.mxu0 0
    %787 = vmatpush1.bf16.msra.mxu0 %v746
    %788 = vmatprep.subr.bf16.mxu0 0
    %789 = vmatpush1.bf16.msra.mxu0 %v747
    %790 = vmatprep.subr.bf16.mxu0 0
    %791 = vmatpush1.bf16.msra.mxu0 %v748
    %792 = vmatprep.subr.bf16.mxu0 0
    %793 = vmatpush1.bf16.msra.mxu0 %v749
    %794 = vmatprep.subr.bf16.mxu0 0
    %795 = vmatpush1.bf16.msra.mxu0 %v750
    %796 = vmatprep.subr.bf16.mxu0 0
    %797 = vmatpush1.bf16.msra.mxu0 %v751
    %798 = vmatprep.subr.bf16.mxu0 0
    %799 = vmatpush1.bf16.msra.mxu0 %v752
    %800 = vmatprep.subr.bf16.mxu0 0
    %801 = vmatpush1.bf16.msra.mxu0 %v753
    %802 = vmatprep.mubr.bf16.mxu0 %v634
    %803 = vmatmul.mubr.bf16.gmra.mrb[0].mxu0 %v633
    %v804 = vpop.f32.mrb[0].mxu0
    %v805 = vadd.f32 %v672, %v804
    %v806 = vpop.f32.mrb[0].mxu0
    %v807 = vpop.f32.mrb[0].mxu0
    %v808 = vpop.f32.mrb[0].mxu0
    %809 = vdwg.mxu0
    %v810 = vsub.f32 0.0, %v805
    %v811 = vmul.f32 %v810, 1.442695
    %v812 = vpow.pop %v811
    %v813 = vadd.f32 %v812, 1.0
    %v814 = vrcp.pop %v813
    %v815 = vmul.f32 1.0, %v814
    %816 = vst [vmem:[#allocation2] sm:$0xff] %v815
    %v817 = vpack.c.bf16 %v815, %v815
    %v818 = vld [vmem:[%s9] sm:$0xf]
    %v819 = vld [vmem:[%s9 + $0x4] sm:$0xf]
    %v820 = vld [vmem:[%s9 + $0x8] sm:$0xf]
    %v821 = vld [vmem:[%s9 + $0xc] sm:$0xf]
    %v822 = vld [vmem:[%s9 + $0x10] sm:$0xf]
    %v823 = vld [vmem:[%s9 + $0x14] sm:$0xf]
    %v824 = vld [vmem:[%s9 + $0x18] sm:$0xf]
    %v825 = vld [vmem:[%s9 + $0x1c] sm:$0xf]
    %v826 = vld [vmem:[%s9 + $0x20] sm:$0xf]
    %v827 = vld [vmem:[%s9 + $0x24] sm:$0xf]
    %v828 = vld [vmem:[%s9 + $0x28] sm:$0xf]
    %v829 = vld [vmem:[%s9 + $0x2c] sm:$0xf]
    %v830 = vld [vmem:[%s9 + $0x30] sm:$0xf]
    %v831 = vld [vmem:[%s9 + $0x34] sm:$0xf]
    %v832 = vld [vmem:[%s9 + $0x38] sm:$0xf]
    %v833 = vld [vmem:[%s9 + $0x3c] sm:$0xf]
    %v834 = vld [vmem:[%s10] sm:$0x1]
    %v836 = vlaneseq
    %v837 = vshrl.u32 %v836, 7
    %v838 = vsub.s32 0, %v837
    %v839 = vrot.slane %v834, %v838
    %v857 = vunpack.c.l.b16 %v818
    %v858 = vunpack.c.l.b16 %v819
    %v859 = vunpack.c.l.b16 %v820
    %v860 = vunpack.c.l.b16 %v821
    %v861 = vunpack.c.l.b16 %v822
    %v862 = vunpack.c.l.b16 %v823
    %v863 = vunpack.c.l.b16 %v824
    %v864 = vunpack.c.l.b16 %v825
    %v865 = vunpack.c.l.b16 %v826
    %v866 = vunpack.c.l.b16 %v827
    %v867 = vunpack.c.l.b16 %v828
    %v868 = vunpack.c.l.b16 %v829
    %v869 = vunpack.c.l.b16 %v830
    %v870 = vunpack.c.l.b16 %v831
    %v871 = vunpack.c.l.b16 %v832
    %v872 = vunpack.c.l.b16 %v833
    %v873 = vpack.c.b16 %v858, %v857
    %v874 = vpack.c.b16 %v860, %v859
    %v875 = vpack.c.b16 %v862, %v861
    %v876 = vpack.c.b16 %v864, %v863
    %v877 = vpack.c.b16 %v866, %v865
    %v878 = vpack.c.b16 %v868, %v867
    %v879 = vpack.c.b16 %v870, %v869
    %v880 = vpack.c.b16 %v872, %v871
    %889 = vmatprep.subr.bf16.mxu0 0
    %890 = vmatpush1.bf16.msra.mxu0 %v873
    %891 = vmatprep.subr.bf16.mxu0 0
    %892 = vmatpush1.bf16.msra.mxu0 %v874
    %893 = vmatprep.subr.bf16.mxu0 0
    %894 = vmatpush1.bf16.msra.mxu0 %v875
    %895 = vmatprep.subr.bf16.mxu0 0
    %896 = vmatpush1.bf16.msra.mxu0 %v876
    %897 = vmatprep.subr.bf16.mxu0 0
    %898 = vmatpush1.bf16.msra.mxu0 %v877
    %899 = vmatprep.subr.bf16.mxu0 0
    %900 = vmatpush1.bf16.msra.mxu0 %v878
    %901 = vmatprep.subr.bf16.mxu0 0
    %902 = vmatpush1.bf16.msra.mxu0 %v879
    %903 = vmatprep.subr.bf16.mxu0 0
    %904 = vmatpush1.bf16.msra.mxu0 %v880
    %905 = vmatprep.subr.bf16.mxu0 0
    %906 = vmatpush1.bf16.msra.mxu0 0
    %907 = vmatprep.subr.bf16.mxu0 0
    %908 = vmatpush1.bf16.msra.mxu0 0
    %909 = vmatprep.subr.bf16.mxu0 0
    %910 = vmatpush1.bf16.msra.mxu0 0
    %911 = vmatprep.subr.bf16.mxu0 0
    %912 = vmatpush1.bf16.msra.mxu0 0
    %913 = vmatprep.subr.bf16.mxu0 0
    %914 = vmatpush1.bf16.msra.mxu0 0
    %915 = vmatprep.subr.bf16.mxu0 0
    %916 = vmatpush1.bf16.msra.mxu0 0
    %917 = vmatprep.subr.bf16.mxu0 0
    %918 = vmatpush1.bf16.msra.mxu0 0
    %919 = vmatprep.subr.bf16.mxu0 0
    %920 = vmatpush1.bf16.msra.mxu0 0
    %921 = vmatprep.mubr.bf16.mxu0 0
    %922 = vmatmul.mubr.bf16.gmra.mrb[0].mxu0 %v817
    %v923 = vpop.f32.mrb[0].mxu0
    %v924 = vadd.f32 %v839, %v923
    %v925 = vpop.f32.mrb[0].mxu0
    %v926 = vpop.f32.mrb[0].mxu0
    %v927 = vpop.f32.mrb[0].mxu0
    %928 = vdwg.mxu0
    %v929 = vmax.f32 %v924, 0.0
    %v930 = vpack.c.bf16 %v929, %v929
    %v931 = vld [vmem:[%s11] sm:$0xf]
    %v932 = vld [vmem:[%s11 + $0x4] sm:$0xf]
    %v933 = vld [vmem:[%s11 + $0x8] sm:$0xf]
    %v934 = vld [vmem:[%s11 + $0xc] sm:$0xf]
    %v935 = vld [vmem:[%s11 + $0x10] sm:$0xf]
    %v936 = vld [vmem:[%s11 + $0x14] sm:$0xf]
    %v937 = vld [vmem:[%s11 + $0x18] sm:$0xf]
    %v938 = vld [vmem:[%s11 + $0x1c] sm:$0xf]
    %v939 = vld [vmem:[%s11 + $0x20] sm:$0xf]
    %v940 = vld [vmem:[%s11 + $0x24] sm:$0xf]
    %v941 = vld [vmem:[%s11 + $0x28] sm:$0xf]
    %v942 = vld [vmem:[%s11 + $0x2c] sm:$0xf]
    %v943 = vld [vmem:[%s11 + $0x30] sm:$0xf]
    %v944 = vld [vmem:[%s11 + $0x34] sm:$0xf]
    %v945 = vld [vmem:[%s11 + $0x38] sm:$0xf]
    %v946 = vld [vmem:[%s11 + $0x3c] sm:$0xf]
    %v947 = vld [vmem:[%s12] sm:$0x1]
    %v949 = vlaneseq
    %v950 = vshrl.u32 %v949, 7
    %v951 = vsub.s32 0, %v950
    %v952 = vrot.slane %v947, %v951
    %v970 = vunpack.c.l.b16 %v931
    %v971 = vunpack.c.l.b16 %v932
    %v972 = vunpack.c.l.b16 %v933
    %v973 = vunpack.c.l.b16 %v934
    %v974 = vunpack.c.l.b16 %v935
    %v975 = vunpack.c.l.b16 %v936
    %v976 = vunpack.c.l.b16 %v937
    %v977 = vunpack.c.l.b16 %v938
    %v978 = vunpack.c.l.b16 %v939
    %v979 = vunpack.c.l.b16 %v940
    %v980 = vunpack.c.l.b16 %v941
    %v981 = vunpack.c.l.b16 %v942
    %v982 = vunpack.c.l.b16 %v943
    %v983 = vunpack.c.l.b16 %v944
    %v984 = vunpack.c.l.b16 %v945
    %v985 = vunpack.c.l.b16 %v946
    %v986 = vpack.c.b16 %v971, %v970
    %v987 = vpack.c.b16 %v973, %v972
    %v988 = vpack.c.b16 %v975, %v974
    %v989 = vpack.c.b16 %v977, %v976
    %v990 = vpack.c.b16 %v979, %v978
    %v991 = vpack.c.b16 %v981, %v980
    %v992 = vpack.c.b16 %v983, %v982
    %v993 = vpack.c.b16 %v985, %v984
    %1002 = vmatprep.subr.bf16.mxu0 0
    %1003 = vmatpush1.bf16.msra.mxu0 %v986
    %1004 = vmatprep.subr.bf16.mxu0 0
    %1005 = vmatpush1.bf16.msra.mxu0 %v987
    %1006 = vmatprep.subr.bf16.mxu0 0
    %1007 = vmatpush1.bf16.msra.mxu0 %v988
    %1008 = vmatprep.subr.bf16.mxu0 0
    %1009 = vmatpush1.bf16.msra.mxu0 %v989
    %1010 = vmatprep.subr.bf16.mxu0 0
    %1011 = vmatpush1.bf16.msra.mxu0 %v990
    %1012 = vmatprep.subr.bf16.mxu0 0
    %1013 = vmatpush1.bf16.msra.mxu0 %v991
    %1014 = vmatprep.subr.bf16.mxu0 0
    %1015 = vmatpush1.bf16.msra.mxu0 %v992
    %1016 = vmatprep.subr.bf16.mxu0 0
    %1017 = vmatpush1.bf16.msra.mxu0 %v993
    %1018 = vmatprep.subr.bf16.mxu0 0
    %1019 = vmatpush1.bf16.msra.mxu0 0
    %1020 = vmatprep.subr.bf16.mxu0 0
    %1021 = vmatpush1.bf16.msra.mxu0 0
    %1022 = vmatprep.subr.bf16.mxu0 0
    %1023 = vmatpush1.bf16.msra.mxu0 0
    %1024 = vmatprep.subr.bf16.mxu0 0
    %1025 = vmatpush1.bf16.msra.mxu0 0
    %1026 = vmatprep.subr.bf16.mxu0 0
    %1027 = vmatpush1.bf16.msra.mxu0 0
    %1028 = vmatprep.subr.bf16.mxu0 0
    %1029 = vmatpush1.bf16.msra.mxu0 0
    %1030 = vmatprep.subr.bf16.mxu0 0
    %1031 = vmatpush1.bf16.msra.mxu0 0
    %1032 = vmatprep.subr.bf16.mxu0 0
    %1033 = vmatpush1.bf16.msra.mxu0 0
    %1034 = vmatprep.mubr.bf16.mxu0 0
    %1035 = vmatmul.mubr.bf16.gmra.mrb[0].mxu0 %v930
    %v1036 = vpop.f32.mrb[0].mxu0
    %v1037 = vadd.f32 %v952, %v1036
    %v1038 = vpop.f32.mrb[0].mxu0
    %v1039 = vpop.f32.mrb[0].mxu0
    %v1040 = vpop.f32.mrb[0].mxu0
    %1041 = vdwg.mxu0
    %1042 = vst [vmem:[#allocation6] sm:$0xff] %v1037
    %v1043 = vlaneseq
    %v1044 = vand.u32 %v1043, 127
    %vm1045 = vcmp.lt.s32.totalorder %v1044, 5
    %v1046 = vsel %vm1045, %v1037, -1e+30
    %1047 = vmax.xlane.f32.xlu0 %v1046
    %v1048 = vpop.xlane.xlu0 %1047
    %v1049 = vsub.f32 %v1046, %v1048
    %v1050 = vmul.f32 %v1049, 1.442695
    %v1051 = vpow.pop %v1050
    %1052 = vadd.xlane.f32.xlu0 %v1051
    %v1053 = vpop.xlane.xlu0 %1052
    %v1054 = vrcp.pop %v1053
    %v1055 = vmul.f32 %v1051, %v1054
    %1056 = vst [vmem:[#allocation4] sm:$0xff] %v1055
    // Predicated region
    $region54: #{cbm_forward.1} parent=1 // pred_check
      _
    $region55: #{cbm_forward.1} parent=1 // pred_check_branch
      %1058 = sbr.rel (0) target = $region57
    $region56: #{cbm_forward.1} parent=1 // pred_region
      %s1060 = ssub.s32 128, 128
      %1061 = vsyncadd [#allocation3], %s1060
      %s1063 = sshll.u32 [#allocation2], 4
      %s1064 = int_to_ptr.vmem [resolvable:$true] %s1063
      %1066 = dma.vmem_to_hbm [thread:$0]  %s1064, 128, %s13, [#allocation3]
    $region57: #{cbm_forward.1} parent=1 // pred_fallthru
      _
    // Predicated region
    $region58: #{cbm_forward.1} parent=1 // pred_check
      _
    $region59: #{cbm_forward.1} parent=1 // pred_check_branch
      %1068 = sbr.rel (0) target = $region61
    $region60: #{cbm_forward.1} parent=1 // pred_region
      %s1070 = ssub.s32 128, 128
      %1071 = vsyncadd [#allocation5], %s1070
      %s1073 = sshll.u32 [#allocation4], 4
      %s1074 = int_to_ptr.vmem [resolvable:$true] %s1073
      %1076 = dma.vmem_to_hbm [thread:$0]  %s1074, 128, %s14, [#allocation5]
    $region61: #{cbm_forward.1} parent=1 // pred_fallthru
      _
    // Predicated region
    $region62: #{cbm_forward.1} parent=1 // pred_check
      _
    $region63: #{cbm_forward.1} parent=1 // pred_check_branch
      %1078 = sbr.rel (0) target = $region65
    $region64: #{cbm_forward.1} parent=1 // pred_region
      %s1080 = ssub.s32 128, 128
      %1081 = vsyncadd [#allocation5], %s1080
      %s1083 = sshll.u32 [#allocation6], 4
      %s1084 = int_to_ptr.vmem [resolvable:$true] %s1083
      %1086 = dma.vmem_to_hbm [thread:$0]  %s1084, 128, %s15, [#allocation5]
    $region65: #{cbm_forward.1} parent=1 // pred_fallthru
      _
    // Predicated region
    $region66: #{cbm_forward.1} parent=1 // pred_check
      _
    $region67: #{cbm_forward.1} parent=1 // pred_check_branch
      %1088 = sbr.rel (0) target = $region69
    $region68: #{cbm_forward.1} parent=1 // pred_region
      %1089 = dma.done [#allocation3], 128
    $region69: #{cbm_forward.1} parent=1 // pred_fallthru
      _
    // Predicated region
    $region70: #{cbm_forward.1} parent=1 // pred_check
      _
    $region71: #{cbm_forward.1} parent=1 // pred_check_branch
      %1091 = sbr.rel (0) target = $region73
    $region72: #{cbm_forward.1} parent=1 // pred_region
      %1092 = dma.done [#allocation5], 128
    $region73: #{cbm_forward.1} parent=1 // pred_fallthru
      _
    // Predicated region
    $region74: #{cbm_forward.1} parent=1 // pred_check
      _
    $region75: #{cbm_forward.1} parent=1 // pred_check_branch
      %1094 = sbr.rel (0) target = $region77
    $region76: #{cbm_forward.1} parent=1 // pred_region
      %1095 = dma.done [#allocation5], 128
    $region77: #{cbm_forward.1} parent=1 // pred_fallthru
      _
    %1096 = vsyncpa [#allocation3], 1
    %1097 = vsyncpa [#allocation5], 1

</llo_original>
